<compile_context>
chip_gen: v7x
topology: tpu7x:2x2x1
jax: 0.10.0
libtpu: 0.0.40
codegen_flags: <defaults>
</compile_context>

<pallas_src>
import jax
import jax.numpy as jnp
from jax.experimental import pallas as pl
from jax.experimental.pallas import tpu as pltpu


def _make_fm_kernel(reduce_sum):
    def kernel(x_ref, smat_ref, o_ref):
        # x_ref: (TB, F*D) lane-dense tile; smat_ref: (F*D, D) stacked identity
        # (VMEM-resident, constant across grid steps); o_ref: (TB, 1) or (TB, D).
        xf = x_ref[...].astype(jnp.float32)                       # whole-tile cast
        # Per-embed-dim field sum on the MXU: s[b, d] = sum_f x[b, f, d].
        s = jnp.dot(xf, smat_ref[...], preferred_element_type=jnp.float32)
        if reduce_sum:
            # sum over fields AND embed dim of x^2: one full-lane square + reduce.
            sum_sq = jnp.sum(xf * xf, axis=1, keepdims=True)      # (TB, 1)
            sq_sum = jnp.sum(s * s, axis=1, keepdims=True)        # (TB, 1)
            o_ref[...] = (0.5 * (sq_sum - sum_sq)).astype(o_ref.dtype)
        else:
            # Per-embed-dim sum of squares via a second MXU matmul with S.
            ss = jnp.dot(xf * xf, smat_ref[...], preferred_element_type=jnp.float32)
            o_ref[...] = (0.5 * (s * s - ss)).astype(o_ref.dtype)

    return kernel


def _sublane_tile(itemsize):
    # f32 -> 8, bf16 -> 16, int8/fp8 -> 32 sublane packing.
    return max(8, 32 // int(itemsize))


def _choose_block_batch(B, fd, itemsize):
    """Batch tile: ~4 MiB per input buffer, capped so large batches get >= 8
    grid steps, rounded to the dtype's sublane tile."""
    sub = _sublane_tile(itemsize)
    per_buffer_budget = 4 * 1024 * 1024            # bytes per (single) input buffer
    tb = per_buffer_budget // max(1, fd * itemsize)
    # Guarantee enough grid steps for DMA/compute overlap + megacore sharding.
    tb = min(tb, max(512, pl.cdiv(B, 8)))
    tb = int(max(sub, tb))
    if tb >= B:
        return B                                   # single full-extent block (small B)
    return max(sub, (tb // sub) * sub)


def factorization_machine(x, reduce_sum=True, block_batch=None):
    """Pallas implementation of FactorizationMachine.forward.

    x: float array of shape (batch_size, num_fields, embed_dim).
    Returns (batch_size, 1) if reduce_sum else (batch_size, embed_dim).
    """
    B, F, D = x.shape
    FD = F * D
    itemsize = jnp.dtype(x.dtype).itemsize
    sub = _sublane_tile(itemsize)

    # Lane-dense 2-D layout: batch -> sublanes, fields*embed -> lanes.
    x2d = x.reshape(B, FD)
    # Stacked-identity reduction matrix: S[f*D + d, d] = 1.
    smat = jnp.tile(jnp.eye(D, dtype=jnp.float32), (F, 1))        # (FD, D)

    if block_batch is not None:
        tb = int(min(block_batch, B))
        if tb < B:
            tb = max(sub, (tb // sub) * sub)
    else:
        tb = _choose_block_batch(B, FD, itemsize)
    if tb >= B:
        tb = B

    grid = (pl.cdiv(B, tb),)
    out_dim = 1 if reduce_sum else D
    out_shape = jax.ShapeDtypeStruct((B, out_dim), x.dtype)
    kernel = _make_fm_kernel(reduce_sum)

    n_mm = 1 if reduce_sum else 2
    cost = pl.CostEstimate(
        flops=2 * B * FD * D * n_mm + 4 * B * FD,
        transcendentals=0,
        bytes_accessed=B * FD * itemsize + B * out_dim * itemsize + FD * D * 4,
    )

    return pl.pallas_call(
        kernel,
        out_shape=out_shape,
        grid=grid,
        in_specs=[
            pl.BlockSpec((tb, FD), lambda i: (i, 0)),
            pl.BlockSpec((FD, D), lambda i: (0, 0)),   # constant block: fetched once
        ],
        out_specs=pl.BlockSpec((tb, out_dim), lambda i: (i, 0)),
        compiler_params=pltpu.CompilerParams(
            dimension_semantics=("parallel",),
            vmem_limit_bytes=32 * 1024 * 1024,
        ),
        cost_estimate=cost,
    )(x2d, smat)


def _fm_reference(x, reduce_sum=True):
    square_of_sum = jnp.sum(x, axis=1) ** 2
    sum_of_square = jnp.sum(x ** 2, axis=1)
    ix = square_of_sum - sum_of_square
    if reduce_sum:
        ix = jnp.sum(ix, axis=1, keepdims=True)
    return 0.5 * ix


if __name__ == "__main__":
    key = jax.random.PRNGKey(0)
    k0, k1 = jax.random.split(key)

    # 1) Small shape, reduce_sum=True (module default).
    batch, num_fields, embed_dim = 2, 4, 32
    x = jax.random.normal(k0, (batch, num_fields, embed_dim), dtype=jnp.float32)
    out = jax.block_until_ready(factorization_machine(x, reduce_sum=True))
    ref = _fm_reference(x, reduce_sum=True)
    assert out.shape == (batch, 1), out.shape
    assert jnp.allclose(out, ref, atol=1e-3, rtol=1e-4), (out, ref)

    # 2) Small shape, reduce_sum=False.
    out2 = jax.block_until_ready(factorization_machine(x, reduce_sum=False))
    ref2 = _fm_reference(x, reduce_sum=False)
    assert out2.shape == (batch, embed_dim), out2.shape
    assert jnp.allclose(out2, ref2, atol=1e-3, rtol=1e-4)

    # 3) Multi-block grid path (several grid steps + a partial last block).
    xb = jax.random.normal(k1, (50, 8, 32), dtype=jnp.float32)
    out3 = jax.block_until_ready(
        factorization_machine(xb, reduce_sum=True, block_batch=16))
    ref3 = _fm_reference(xb, reduce_sum=True)
    assert out3.shape == (50, 1), out3.shape
    assert jnp.allclose(out3, ref3, atol=1e-3, rtol=1e-4)

    out4 = jax.block_until_ready(
        factorization_machine(xb, reduce_sum=False, block_batch=16))
    ref4 = _fm_reference(xb, reduce_sum=False)
    assert out4.shape == (50, 32), out4.shape
    assert jnp.allclose(out4, ref4, atol=1e-3, rtol=1e-4)

    print("KERNEL_OK")
</pallas_src>

<mosaic_0001>
module attributes {stable_mosaic.version = 11 : i64} {
  func.func @kernel(%arg0: i32, %arg1: memref<2x128xf32, #tpu.memory_space<vmem>>, %arg2: memref<128x32xf32, #tpu.memory_space<vmem>>, %arg3: memref<2x1xf32, #tpu.memory_space<vmem>>) attributes {dimension_semantics = [#tpu.dimension_semantics<parallel>], iteration_bounds = array<i64: 1>, scalar_prefetch = 0 : i64, scratch_operands = 0 : i64, tpu.core_type = #tpu.core_type<tc>, window_params = [{transform_indices = @transform_0, window_bounds = array<i64: 2, 128>}, {pipeline_mode = #tpu.pipeline_mode<synchronous>, transform_indices = @transform_1, window_bounds = array<i64: 128, 32>}, {transform_indices = @transform_2, window_bounds = array<i64: 2, 1>}]} {
    %c0 = arith.constant 0 : index
    %c0_0 = arith.constant 0 : index
    %0 = vector.load %arg1[%c0, %c0_0] : memref<2x128xf32, #tpu.memory_space<vmem>>, vector<2x128xf32>
    %c0_1 = arith.constant 0 : index
    %c0_2 = arith.constant 0 : index
    %1 = vector.load %arg2[%c0_1, %c0_2] : memref<128x32xf32, #tpu.memory_space<vmem>>, vector<128x32xf32>
    %cst = arith.constant dense<0.000000e+00> : vector<2x32xf32>
    %2 = tpu.matmul %0, %1, %cst {dimension_numbers = #tpu.dot_dimension_numbers<[1], [0], [0], [1], [0, 0, 1, 1], [], []>} : vector<2x128xf32>, vector<128x32xf32>, vector<2x32xf32> -> vector<2x32xf32>
    %3 = arith.mulf %0, %0 : vector<2x128xf32>
    %cst_3 = arith.constant dense<0.000000e+00> : vector<2xf32>
    %4 = vector.multi_reduction <add>, %3, %cst_3 [1] : vector<2x128xf32> to vector<2xf32>
    %5 = vector.shape_cast %4 : vector<2xf32> to vector<2x1xf32>
    %6 = arith.mulf %2, %2 : vector<2x32xf32>
    %cst_4 = arith.constant dense<0.000000e+00> : vector<2xf32>
    %7 = vector.multi_reduction <add>, %6, %cst_4 [1] : vector<2x32xf32> to vector<2xf32>
    %8 = vector.shape_cast %7 : vector<2xf32> to vector<2x1xf32>
    %9 = arith.subf %8, %5 : vector<2x1xf32>
    %cst_5 = arith.constant 5.000000e-01 : f32
    %10 = vector.broadcast %cst_5 : f32 to vector<2x1xf32>
    %11 = arith.mulf %10, %9 : vector<2x1xf32>
    %c0_6 = arith.constant 0 : index
    %c0_7 = arith.constant 0 : index
    %12 = vector.load %arg3[%c0_6, %c0_7] : memref<2x1xf32, #tpu.memory_space<vmem>>, vector<2x1xf32>
    tpu.vector_store %arg3[%c0_6, %c0_7], %11 {strides = array<i32>} : memref<2x1xf32, #tpu.memory_space<vmem>>, vector<2x1xf32>,
    return
  }
  func.func @transform_0(%arg0: i32) -> (i32, i32) {
    %c0_i32 = arith.constant 0 : i32
    %c0_i32_0 = arith.constant 0 : i32
    return %arg0, %c0_i32 : i32, i32
  }
  func.func @transform_1(%arg0: i32) -> (i32, i32) {
    %c0_i32 = arith.constant 0 : i32
    %c0_i32_0 = arith.constant 0 : i32
    %c0_i32_1 = arith.constant 0 : i32
    return %c0_i32, %c0_i32_0 : i32, i32
  }
  func.func @transform_2(%arg0: i32) -> (i32, i32) {
    %c0_i32 = arith.constant 0 : i32
    %c0_i32_0 = arith.constant 0 : i32
    return %arg0, %c0_i32 : i32, i32
  }
}

</mosaic_0001>

<llo_original>
// kernel: tpu_custom_call.1
$region0: #{tpu_custom_call.1}
  #allocation0 [shape = 'u32[]', space=smem, size = 0x4, offset = 0x4, fixed_abs, tag = 'smem constant byte address 0x4 - core index']
  #allocation1 [shape = 'u32[144,128]{1,0:T(1,128)}', space=vmem, size = 0x12000, scoped, tag = 'internal scratch']
  %s0 = inlined_call_operand.vmem [shape: f32[2,128], index: 0, kind: input, shape index: {}]
  %s1 = inlined_call_operand.vmem [shape: f32[128,32], index: 1, kind: input, shape index: {}]
  %s2 = inlined_call_operand.vmem [shape: f32[2,1], index: 2, kind: output, shape index: {}]
  %s3 = sld [smem:[#allocation0]]
  $region18: #{tpu_custom_call.1} parent=0
    _
  %s5 = ssub.s32 1, %s3
  %s6 = scalar_select 0, %s5, %s3
  // Predicated region
  $region2: #{tpu_custom_call.1} parent=0 // pred_check
    _
  $region3: #{tpu_custom_call.1} parent=0 // pred_check_branch
    %8 = sbr.rel (0) target = $region5
  $region4: #{tpu_custom_call.1} parent=0 // pred_region
    _
  $region5: #{tpu_custom_call.1} parent=0 // pred_fallthru
    _
  // Predicated region
  $region6: #{tpu_custom_call.1} parent=0 // pred_check
    _
  $region7: #{tpu_custom_call.1} parent=0 // pred_check_branch
    %10 = sbr.rel (0) target = $region9
  $region8: #{tpu_custom_call.1} parent=0 // pred_region
    _
  $region9: #{tpu_custom_call.1} parent=0 // pred_fallthru
    _
  %v11 = vld [vmem:[%s0] sm:$0x3]
  %v12 = vld [vmem:[%s1] sm:$0xff]
  %v13 = vld [vmem:[%s1 + $0x8] sm:$0xff]
  %v14 = vld [vmem:[%s1 + $0x10] sm:$0xff]
  %v15 = vld [vmem:[%s1 + $0x18] sm:$0xff]
  %v16 = vld [vmem:[%s1 + $0x20] sm:$0xff]
  %v17 = vld [vmem:[%s1 + $0x28] sm:$0xff]
  %v18 = vld [vmem:[%s1 + $0x30] sm:$0xff]
  %v19 = vld [vmem:[%s1 + $0x38] sm:$0xff]
  %v20 = vld [vmem:[%s1 + $0x40] sm:$0xff]
  %v21 = vld [vmem:[%s1 + $0x48] sm:$0xff]
  %v22 = vld [vmem:[%s1 + $0x50] sm:$0xff]
  %v23 = vld [vmem:[%s1 + $0x58] sm:$0xff]
  %v24 = vld [vmem:[%s1 + $0x60] sm:$0xff]
  %v25 = vld [vmem:[%s1 + $0x68] sm:$0xff]
  %v26 = vld [vmem:[%s1 + $0x70] sm:$0xff]
  %v27 = vld [vmem:[%s1 + $0x78] sm:$0xff]
  %28 = vmatprep.subr.mxu0 0.0
  %29 = vmatpush1.msra.mxu0 %v12
  %30 = vmatprep.subr.mxu0 0.0
  %31 = vmatpush1.msra.mxu0 %v13
  %32 = vmatprep.subr.mxu0 0.0
  %33 = vmatpush1.msra.mxu0 %v14
  %34 = vmatprep.subr.mxu0 0.0
  %35 = vmatpush1.msra.mxu0 %v15
  %36 = vmatprep.subr.mxu0 0.0
  %37 = vmatpush1.msra.mxu0 %v16
  %38 = vmatprep.subr.mxu0 0.0
  %39 = vmatpush1.msra.mxu0 %v17
  %40 = vmatprep.subr.mxu0 0.0
  %41 = vmatpush1.msra.mxu0 %v18
  %42 = vmatprep.subr.mxu0 0.0
  %43 = vmatpush1.msra.mxu0 %v19
  %44 = vmatprep.subr.mxu0 0.0
  %45 = vmatpush1.msra.mxu0 %v20
  %46 = vmatprep.subr.mxu0 0.0
  %47 = vmatpush1.msra.mxu0 %v21
  %48 = vmatprep.subr.mxu0 0.0
  %49 = vmatpush1.msra.mxu0 %v22
  %50 = vmatprep.subr.mxu0 0.0
  %51 = vmatpush1.msra.mxu0 %v23
  %52 = vmatprep.subr.mxu0 0.0
  %53 = vmatpush1.msra.mxu0 %v24
  %54 = vmatprep.subr.mxu0 0.0
  %55 = vmatpush1.msra.mxu0 %v25
  %56 = vmatprep.subr.mxu0 0.0
  %57 = vmatpush1.msra.mxu0 %v26
  %58 = vmatprep.subr.mxu0 0.0
  %59 = vmatpush1.msra.mxu0 %v27
  %60 = vmatprep.subr.mxu0 0.0
  %61 = vmatpush1.msra.mxu0 0.0
  %62 = vmatprep.subr.mxu0 0.0
  %63 = vmatpush1.msra.mxu0 0.0
  %64 = vmatprep.subr.mxu0 0.0
  %65 = vmatpush1.msra.mxu0 0.0
  %66 = vmatprep.subr.mxu0 0.0
  %67 = vmatpush1.msra.mxu0 0.0
  %68 = vmatprep.subr.mxu0 0.0
  %69 = vmatpush1.msra.mxu0 0.0
  %70 = vmatprep.subr.mxu0 0.0
  %71 = vmatpush1.msra.mxu0 0.0
  %72 = vmatprep.subr.mxu0 0.0
  %73 = vmatpush1.msra.mxu0 0.0
  %74 = vmatprep.subr.mxu0 0.0
  %75 = vmatpush1.msra.mxu0 0.0
  %76 = vmatprep.subr.mxu0 0.0
  %77 = vmatpush1.msra.mxu0 0.0
  %78 = vmatprep.subr.mxu0 0.0
  %79 = vmatpush1.msra.mxu0 0.0
  %80 = vmatprep.subr.mxu0 0.0
  %81 = vmatpush1.msra.mxu0 0.0
  %82 = vmatprep.subr.mxu0 0.0
  %83 = vmatpush1.msra.mxu0 0.0
  %84 = vmatprep.subr.mxu0 0.0
  %85 = vmatpush1.msra.mxu0 0.0
  %86 = vmatprep.subr.mxu0 0.0
  %87 = vmatpush1.msra.mxu0 0.0
  %88 = vmatprep.subr.mxu0 0.0
  %89 = vmatpush1.msra.mxu0 0.0
  %90 = vmatprep.subr.mxu0 0.0
  %91 = vmatpush1.msra.mxu0 0.0
  %92 = vmatprep.mubr.f32.mxu0 0.0
  %93 = vmatmul.mubr.f32.gmra.mrb[0].mxu0 %v11
  %v94 = vpop.f32.mrb[0].mxu0
  %v95 = vadd.f32 0.0, %v94
  %v96 = vpop.f32.mrb[0].mxu0
  %97 = vdwg.mxu0
  %v98 = vmul.f32 %v11, %v11
  %vm99 = vcmask 1041408
  %v100 = vsel %vm99, %v98, 0.0
  %101 = vadd.xlane.f32.xlu0 %v100
  %v102 = vpop.xlane.xlu0 %101
  %v103 = vmul.f32 %v95, %v95
  %vm104 = vcmask 254976
  %v105 = vsel %vm104, %v103, 0.0
  %106 = vadd.xlane.f32.xlu0 %v105
  %v107 = vpop.xlane.xlu0 %106
  %v108 = vsub.f32 %v107, %v102
  %v109 = vmul.f32 %v108, 0.5
  %vm110 = vcmask 1024
  %111 = vst.msk [vmem:[%s2] sm:$0x3] %vm110, %v109
  // Predicated region
  $region10: #{tpu_custom_call.1} parent=0 // pred_check
    _
  $region11: #{tpu_custom_call.1} parent=0 // pred_check_branch
    %113 = sbr.rel (0) target = $region13
  $region12: #{tpu_custom_call.1} parent=0 // pred_region
    _
  $region13: #{tpu_custom_call.1} parent=0 // pred_fallthru
    _
  // Predicated region
  $region14: #{tpu_custom_call.1} parent=0 // pred_check
    _
  $region15: #{tpu_custom_call.1} parent=0 // pred_check_branch
    %115 = sbr.rel (0) target = $region17
  $region16: #{tpu_custom_call.1} parent=0 // pred_region
    _
  $region17: #{tpu_custom_call.1} parent=0 // pred_fallthru
    _

</llo_original>
